<compile_context>
chip_gen: v7x
topology: tpu7x:2x2x1
jax: 0.10.0
libtpu: 0.0.40
codegen_flags: <defaults>
</compile_context>

<pallas_src>
import functools

import jax
import jax.numpy as jnp
from jax.experimental import pallas as pl
from jax.experimental.pallas import tpu as pltpu


def _round_up(x, m):
    return ((x + m - 1) // m) * m


def _pick_images_per_block(num_images, rows_per_image, target_rows=256, max_unroll=8):
    """Pick images per grid step: keep blocks reasonably sized (amortize the
    ~0.35us/step cost) while leaving >=2 grid steps for v7x core parallelism."""
    best = 1
    for cand in range(1, min(num_images, max_unroll) + 1):
        if num_images % cand:
            continue
        if cand * rows_per_image > target_rows:
            break
        if num_images // cand < min(2, num_images):
            continue
        best = cand
    return best


def _postprocess_kernel(has_att, n_lane, obj_ref, rel_ref, pair_ref, *rest):
    """Fused per-image post-processing.

    Refs (block shapes, leading dim = images_per_block):
      obj_ref    (B, n_obj_pad, c_obj)   f32   object logits
      rel_ref    (B, n_rel_pad, c_rel)   f32   relation logits
      pair_ref   (B, n_rel_pad, 2)       i32   per-image pair indices
      att_ref    (B, n_obj_pad, n_att)   f32   (only when has_att)
      packed_ref (B, 8, n_lane)          f32   rows: obj_scores, obj_pred,
                                               rel_class, triple (lane-dense)
      rel_prob_ref (B, n_rel_pad, c_rel) f32   relation softmax
      att_prob_ref (B, n_obj_pad, n_att) f32   (only when has_att)
    """
    if has_att:
        att_ref, packed_ref, rel_prob_ref, att_prob_ref = rest
    else:
        att_ref, att_prob_ref = None, None
        packed_ref, rel_prob_ref = rest

    B = obj_ref.shape[0]
    for b in range(B):  # static unroll over the images in this block
        ol = obj_ref[b].astype(jnp.float32)           # (n_obj_pad, c_obj)
        n_obj, c_obj = ol.shape
        rl = rel_ref[b].astype(jnp.float32)           # (n_rel_pad, c_rel)
        n_rel, c_rel = rl.shape
        pair = pair_ref[b]                            # (n_rel_pad, 2) int32

        # ---- object branch: score = max softmax prob over classes 1:, exact argmax on logits ----
        ocol = jax.lax.broadcasted_iota(jnp.int32, (n_obj, c_obj), 1)
        m_all = jnp.max(ol, axis=-1, keepdims=True)
        # approx reciprocal -> EUP slot; only shifts pred_scores at vrcp precision
        inv_den = pl.reciprocal(
            jnp.sum(jnp.exp(ol - m_all), axis=-1, keepdims=True), approx=True)
        ol_fg = jnp.where(ocol == 0, -jnp.inf, ol)    # background column excluded
        m_fg = jnp.max(ol_fg, axis=-1, keepdims=True)
        obj_scores = jnp.exp(m_fg - m_all) * inv_den                   # (n_obj, 1)
        obj_pred = jnp.min(jnp.where(ol_fg == m_fg, ocol, c_obj),
                           axis=-1, keepdims=True)                     # (n_obj, 1) int, >=1

        # ---- relation branch: full softmax (exported) + score/argmax over classes 1: ----
        rcol = jax.lax.broadcasted_iota(jnp.int32, (n_rel, c_rel), 1)
        rm_all = jnp.max(rl, axis=-1, keepdims=True)
        re_ = jnp.exp(rl - rm_all)
        r_inv = pl.reciprocal(jnp.sum(re_, axis=-1, keepdims=True), approx=False)
        rprob = re_ * r_inv
        rl_fg = jnp.where(rcol == 0, -jnp.inf, rl)
        rm_fg = jnp.max(rl_fg, axis=-1, keepdims=True)
        rel_scores = jnp.exp(rm_fg - rm_all) * r_inv                   # (n_rel, 1)
        rel_class = jnp.min(jnp.where(rl_fg == rm_fg, rcol, c_rel),
                            axis=-1, keepdims=True)                    # (n_rel, 1) int, >=1
        rel_prob_ref[b] = rprob

        # ---- column (rows,1) -> lane row (1,n_lane): VPU select + XLU sublane sum ----
        def col_to_lane_row(col_f32, n_rows):
            sub = jax.lax.broadcasted_iota(jnp.int32, (n_rows, n_lane), 0)
            lane = jax.lax.broadcasted_iota(jnp.int32, (n_rows, n_lane), 1)
            return jnp.sum(jnp.where(sub == lane, col_f32, 0.0),
                           axis=0, keepdims=True)

        scores_row = col_to_lane_row(obj_scores, n_obj)                # (1, n_lane)

        # ---- pair gather on VPU/XLU (no MXU one-hot matmuls) ----
        lane_iota = jax.lax.broadcasted_iota(jnp.int32, (n_rel, n_lane), 1)
        idx0 = pair[:, 0:1]
        idx1 = pair[:, 1:2]
        s0 = jnp.sum(jnp.where(lane_iota == idx0, scores_row, 0.0),
                     axis=-1, keepdims=True)
        s1 = jnp.sum(jnp.where(lane_iota == idx1, scores_row, 0.0),
                     axis=-1, keepdims=True)
        triple = rel_scores * s0 * s1                                  # (n_rel, 1)

        # ---- pack the four per-row scalars into one lane-dense slab ----
        pred_row = col_to_lane_row(obj_pred.astype(jnp.float32), n_obj)    # exact (small ints)
        relcls_row = col_to_lane_row(rel_class.astype(jnp.float32), n_rel)
        triple_row = col_to_lane_row(triple, n_rel)
        sub8 = jax.lax.broadcasted_iota(jnp.int32, (8, n_lane), 0)
        packed = (jnp.where(sub8 == 0, scores_row, 0.0)
                  + jnp.where(sub8 == 1, pred_row, 0.0)
                  + jnp.where(sub8 == 2, relcls_row, 0.0)
                  + jnp.where(sub8 == 3, triple_row, 0.0))
        packed_ref[b] = packed

        # ---- attribute branch (only compiled in when attributes are on) ----
        if has_att:
            att_prob_ref[b] = jax.nn.sigmoid(att_ref[b].astype(jnp.float32))


def _build_call(num_images, ipb, n_obj_pad, c_obj, n_rel_pad, c_rel,
                n_att, n_lane, has_att):
    grid = (num_images // ipb,)
    kernel = functools.partial(_postprocess_kernel, has_att, n_lane)

    in_specs = [
        pl.BlockSpec((ipb, n_obj_pad, c_obj), lambda i: (i, 0, 0)),
        pl.BlockSpec((ipb, n_rel_pad, c_rel), lambda i: (i, 0, 0)),
        pl.BlockSpec((ipb, n_rel_pad, 2), lambda i: (i, 0, 0)),
    ]
    out_shapes = [
        jax.ShapeDtypeStruct((num_images, 8, n_lane), jnp.float32),      # packed scalars
        jax.ShapeDtypeStruct((num_images, n_rel_pad, c_rel), jnp.float32),  # rel_class_prob
    ]
    out_specs = [
        pl.BlockSpec((ipb, 8, n_lane), lambda i: (i, 0, 0)),
        pl.BlockSpec((ipb, n_rel_pad, c_rel), lambda i: (i, 0, 0)),
    ]
    if has_att:
        in_specs.append(pl.BlockSpec((ipb, n_obj_pad, n_att), lambda i: (i, 0, 0)))
        out_shapes.append(jax.ShapeDtypeStruct((num_images, n_obj_pad, n_att),
                                               jnp.float32))
        out_specs.append(pl.BlockSpec((ipb, n_obj_pad, n_att), lambda i: (i, 0, 0)))

    return pl.pallas_call(
        kernel,
        grid=grid,
        out_shape=tuple(out_shapes),
        in_specs=in_specs,
        out_specs=tuple(out_specs),
        compiler_params=pltpu.CompilerParams(
            dimension_semantics=("parallel",)),     # v7x: shard images across both TCs
    )


class PostProcessor:
    """JAX/Pallas port of the relation-head PostProcessor (use_gt_box=True path)."""

    def __init__(self, attribute_on, use_gt_box=False, later_nms_pred_thres=0.3):
        self.attribute_on = attribute_on
        self.use_gt_box = use_gt_box
        self.later_nms_pred_thres = later_nms_pred_thres

    def forward(self, x, rel_pair_idxs, boxes):
        relation_logits, refine_logits = x
        if self.attribute_on:
            if isinstance(refine_logits[0], (list, tuple)):
                finetune_obj_logits, finetune_att_logits = refine_logits
            else:
                self.attribute_on = False   # matches reference behavior
                finetune_obj_logits = refine_logits
        else:
            finetune_obj_logits = refine_logits

        if not self.use_gt_box:
            # TODO(synk): obj_prediction_nms / Box3dList regressed-box branch relies on
            # external NMS + box containers not defined in this module.
            raise NotImplementedError("only use_gt_box=True path is implemented")

        num_images = len(relation_logits)
        n_obj_list = [int(o.shape[0]) for o in finetune_obj_logits]
        n_rel_list = [int(r.shape[0]) for r in relation_logits]
        c_obj = int(finetune_obj_logits[0].shape[1])
        c_rel = int(relation_logits[0].shape[1])
        n_obj_pad = _round_up(max(n_obj_list), 8)
        n_rel_pad = _round_up(max(n_rel_list), 8)
        n_lane = _round_up(max(n_obj_pad, n_rel_pad), 128)

        def pad_rows(a, rows):
            pad = rows - a.shape[0]
            return a if pad == 0 else jnp.pad(a, ((0, pad), (0, 0)))

        # --- batch all images into one pallas_call (single launch) ---
        obj_b = jnp.stack([pad_rows(o.astype(jnp.float32), n_obj_pad)
                           for o in finetune_obj_logits])
        rel_b = jnp.stack([pad_rows(r.astype(jnp.float32), n_rel_pad)
                           for r in relation_logits])
        pair_b = jnp.stack([pad_rows(p.astype(jnp.int32), n_rel_pad)
                            for p in rel_pair_idxs])

        has_att = bool(self.attribute_on)
        inputs = [obj_b, rel_b, pair_b]
        n_att = 1
        if has_att:
            n_att = int(finetune_att_logits[0].shape[1])
            att_b = jnp.stack([pad_rows(a.astype(jnp.float32), n_obj_pad)
                               for a in finetune_att_logits])
            inputs.append(att_b)

        ipb = _pick_images_per_block(num_images, max(n_obj_pad, n_rel_pad))
        call = _build_call(num_images, ipb, n_obj_pad, c_obj, n_rel_pad, c_rel,
                           n_att, n_lane, has_att)
        outs = call(*inputs)
        if has_att:
            packed, rel_prob_b, att_prob_b = outs
        else:
            packed, rel_prob_b = outs
            att_prob_b = None

        results = []
        for i, box in enumerate(boxes):
            n_obj = n_obj_list[i]
            n_rel = n_rel_list[i]

            obj_scores = packed[i, 0, :n_obj]
            obj_pred = jnp.round(packed[i, 1, :n_obj]).astype(jnp.int32)
            rel_class = jnp.round(packed[i, 2, :n_rel]).astype(jnp.int32)
            triple = packed[i, 3, :n_rel]
            rel_prob = rel_prob_b[i, :n_rel, :]

            # descending sort of triple scores (glue; no clean Pallas sort primitive)
            sorting_idx = jnp.argsort(-triple)

            boxlist = dict(box)  # stand-in for Box3dList (use_gt_box => reuse gt boxes)
            boxlist['pred_labels'] = obj_pred
            boxlist['pred_scores'] = obj_scores
            if has_att:
                boxlist['pred_attributes'] = att_prob_b[i, :n_obj, :]
            boxlist['rel_pair_idxs'] = rel_pair_idxs[i][sorting_idx]
            boxlist['pred_rel_scores'] = rel_prob[sorting_idx]
            boxlist['pred_rel_labels'] = rel_class[sorting_idx]
            results.append(boxlist)
        return results

    __call__ = forward


if __name__ == "__main__":
    key = jax.random.PRNGKey(0)
    num_images = 2
    n_obj, c_obj = 8, 32      # boxes per image, object classes (incl. background)
    n_rel, c_rel = 16, 16     # relation pairs, relation classes (incl. background)
    n_att = 8                 # attribute classes

    relation_logits, obj_logits, att_logits, rel_pair_idxs, boxes = [], [], [], [], []
    for img in range(num_images):
        key, k1, k2, k3, k4, k5 = jax.random.split(key, 6)
        relation_logits.append(jax.random.normal(k1, (n_rel, c_rel), jnp.float32))
        obj_logits.append(jax.random.normal(k2, (n_obj, c_obj), jnp.float32))
        att_logits.append(jax.random.normal(k3, (n_obj, n_att), jnp.float32))
        rel_pair_idxs.append(jax.random.randint(k4, (n_rel, 2), 0, n_obj, jnp.int32))
        boxes.append({'boxes': jax.random.uniform(k5, (n_obj, 4), jnp.float32) * 100.0,
                      'size': (128, 128)})

    post = PostProcessor(attribute_on=True, use_gt_box=True, later_nms_pred_thres=0.3)
    x = (relation_logits, (obj_logits, att_logits))
    results = post(x, rel_pair_idxs, boxes)

    for r in results:
        for k, v in r.items():
            if isinstance(v, jax.Array):
                jax.block_until_ready(v)

    print("KERNEL_OK")
</pallas_src>

<mosaic_0001>
module attributes {stable_mosaic.version = 11 : i64} {
  func.func @_postprocess_kernel(%arg0: i32, %arg1: memref<1x8x32xf32, #tpu.memory_space<vmem>>, %arg2: memref<1x16x16xf32, #tpu.memory_space<vmem>>, %arg3: memref<1x16x2xi32, #tpu.memory_space<vmem>>, %arg4: memref<1x8x8xf32, #tpu.memory_space<vmem>>, %arg5: memref<1x8x128xf32, #tpu.memory_space<vmem>>, %arg6: memref<1x16x16xf32, #tpu.memory_space<vmem>>, %arg7: memref<1x8x8xf32, #tpu.memory_space<vmem>>) attributes {dimension_semantics = [#tpu.dimension_semantics<parallel>], iteration_bounds = array<i64: 2>, scalar_prefetch = 0 : i64, scratch_operands = 0 : i64, tpu.core_type = #tpu.core_type<tc>, window_params = [{transform_indices = @transform_0, window_bounds = array<i64: 1, 8, 32>}, {transform_indices = @transform_1, window_bounds = array<i64: 1, 16, 16>}, {transform_indices = @transform_2, window_bounds = array<i64: 1, 16, 2>}, {transform_indices = @transform_3, window_bounds = array<i64: 1, 8, 8>}, {transform_indices = @transform_4, window_bounds = array<i64: 1, 8, 128>}, {transform_indices = @transform_5, window_bounds = array<i64: 1, 16, 16>}, {transform_indices = @transform_6, window_bounds = array<i64: 1, 8, 8>}]} {
    %c0 = arith.constant 0 : index
    %c0_0 = arith.constant 0 : index
    %c0_1 = arith.constant 0 : index
    %0 = vector.load %arg1[%c0, %c0_0, %c0_1] : memref<1x8x32xf32, #tpu.memory_space<vmem>>, vector<1x8x32xf32>
    %1 = vector.shape_cast %0 : vector<1x8x32xf32> to vector<8x32xf32>
    %c0_2 = arith.constant 0 : index
    %c0_3 = arith.constant 0 : index
    %c0_4 = arith.constant 0 : index
    %2 = vector.load %arg2[%c0_2, %c0_3, %c0_4] : memref<1x16x16xf32, #tpu.memory_space<vmem>>, vector<1x16x16xf32>
    %3 = vector.shape_cast %2 : vector<1x16x16xf32> to vector<16x16xf32>
    %c0_5 = arith.constant 0 : index
    %c0_6 = arith.constant 0 : index
    %c0_7 = arith.constant 0 : index
    %4 = vector.load %arg3[%c0_5, %c0_6, %c0_7] : memref<1x16x2xi32, #tpu.memory_space<vmem>>, vector<1x16x2xi32>
    %5 = vector.shape_cast %4 : vector<1x16x2xi32> to vector<16x2xi32>
    %6 = tpu.iota {dimensions = array<i32: 1>} : vector<8x32xi32>
    %cst = arith.constant dense<0xFF800000> : vector<8xf32>
    %7 = vector.multi_reduction <maximumf>, %1, %cst [1] : vector<8x32xf32> to vector<8xf32>
    %8 = vector.shape_cast %7 : vector<8xf32> to vector<8x1xf32>
    %9 = vector.broadcast %8 : vector<8x1xf32> to vector<8x32xf32>
    %10 = arith.subf %1, %9 : vector<8x32xf32>
    %11 = math.exp %10 : vector<8x32xf32>
    %cst_8 = arith.constant dense<0.000000e+00> : vector<8xf32>
    %12 = vector.multi_reduction <add>, %11, %cst_8 [1] : vector<8x32xf32> to vector<8xf32>
    %13 = vector.shape_cast %12 : vector<8xf32> to vector<8x1xf32>
    %14 = tpu.reciprocal %13 {approx = true} : vector<8x1xf32> -> vector<8x1xf32>
    %c0_i32 = arith.constant 0 : i32
    %15 = vector.broadcast %c0_i32 : i32 to vector<8x32xi32>
    %16 = arith.cmpi eq, %6, %15 : vector<8x32xi32>
    %cst_9 = arith.constant 0xFF800000 : f32
    %17 = vector.broadcast %cst_9 : f32 to vector<8x32xf32>
    %18 = arith.select %16, %17, %1 : vector<8x32xi1>, vector<8x32xf32>
    %cst_10 = arith.constant dense<0xFF800000> : vector<8xf32>
    %19 = vector.multi_reduction <maximumf>, %18, %cst_10 [1] : vector<8x32xf32> to vector<8xf32>
    %20 = vector.shape_cast %19 : vector<8xf32> to vector<8x1xf32>
    %21 = arith.subf %20, %8 : vector<8x1xf32>
    %22 = math.exp %21 : vector<8x1xf32>
    %23 = arith.mulf %22, %14 : vector<8x1xf32>
    %24 = vector.broadcast %20 : vector<8x1xf32> to vector<8x32xf32>
    %25 = arith.cmpf oeq, %18, %24 : vector<8x32xf32>
    %c32_i32 = arith.constant 32 : i32
    %26 = vector.broadcast %c32_i32 : i32 to vector<8x32xi32>
    %27 = arith.select %25, %6, %26 : vector<8x32xi1>, vector<8x32xi32>
    %cst_11 = arith.constant dense<2147483647> : vector<8xi32>
    %28 = vector.multi_reduction <minsi>, %27, %cst_11 [1] : vector<8x32xi32> to vector<8xi32>
    %29 = vector.shape_cast %28 : vector<8xi32> to vector<8x1xi32>
    %30 = tpu.iota {dimensions = array<i32: 1>} : vector<16x16xi32>
    %cst_12 = arith.constant dense<0xFF800000> : vector<16xf32>
    %31 = vector.multi_reduction <maximumf>, %3, %cst_12 [1] : vector<16x16xf32> to vector<16xf32>
    %32 = vector.shape_cast %31 : vector<16xf32> to vector<16x1xf32>
    %33 = vector.broadcast %32 : vector<16x1xf32> to vector<16x16xf32>
    %34 = arith.subf %3, %33 : vector<16x16xf32>
    %35 = math.exp %34 : vector<16x16xf32>
    %cst_13 = arith.constant dense<0.000000e+00> : vector<16xf32>
    %36 = vector.multi_reduction <add>, %35, %cst_13 [1] : vector<16x16xf32> to vector<16xf32>
    %37 = vector.shape_cast %36 : vector<16xf32> to vector<16x1xf32>
    %38 = tpu.reciprocal %37 : vector<16x1xf32> -> vector<16x1xf32>
    %39 = vector.broadcast %38 : vector<16x1xf32> to vector<16x16xf32>
    %40 = arith.mulf %35, %39 : vector<16x16xf32>
    %c0_i32_14 = arith.constant 0 : i32
    %41 = vector.broadcast %c0_i32_14 : i32 to vector<16x16xi32>
    %42 = arith.cmpi eq, %30, %41 : vector<16x16xi32>
    %cst_15 = arith.constant 0xFF800000 : f32
    %43 = vector.broadcast %cst_15 : f32 to vector<16x16xf32>
    %44 = arith.select %42, %43, %3 : vector<16x16xi1>, vector<16x16xf32>
    %cst_16 = arith.constant dense<0xFF800000> : vector<16xf32>
    %45 = vector.multi_reduction <maximumf>, %44, %cst_16 [1] : vector<16x16xf32> to vector<16xf32>
    %46 = vector.shape_cast %45 : vector<16xf32> to vector<16x1xf32>
    %47 = arith.subf %46, %32 : vector<16x1xf32>
    %48 = math.exp %47 : vector<16x1xf32>
    %49 = arith.mulf %48, %38 : vector<16x1xf32>
    %50 = vector.broadcast %46 : vector<16x1xf32> to vector<16x16xf32>
    %51 = arith.cmpf oeq, %44, %50 : vector<16x16xf32>
    %c16_i32 = arith.constant 16 : i32
    %52 = vector.broadcast %c16_i32 : i32 to vector<16x16xi32>
    %53 = arith.select %51, %30, %52 : vector<16x16xi1>, vector<16x16xi32>
    %cst_17 = arith.constant dense<2147483647> : vector<16xi32>
    %54 = vector.multi_reduction <minsi>, %53, %cst_17 [1] : vector<16x16xi32> to vector<16xi32>
    %55 = vector.shape_cast %54 : vector<16xi32> to vector<16x1xi32>
    %c0_18 = arith.constant 0 : index
    %c0_19 = arith.constant 0 : index
    %c0_20 = arith.constant 0 : index
    %56 = vector.load %arg6[%c0_18, %c0_19, %c0_20] : memref<1x16x16xf32, #tpu.memory_space<vmem>>, vector<1x16x16xf32>
    %57 = vector.shape_cast %56 : vector<1x16x16xf32> to vector<16x16xf32>
    %58 = vector.shape_cast %40 : vector<16x16xf32> to vector<1x16x16xf32>
    tpu.vector_store %arg6[%c0_18, %c0_19, %c0_20], %58 {strides = array<i32>} : memref<1x16x16xf32, #tpu.memory_space<vmem>>, vector<1x16x16xf32>,
    %59 = tpu.iota {dimensions = array<i32: 0>} : vector<8x128xi32>
    %60 = tpu.iota {dimensions = array<i32: 1>} : vector<8x128xi32>
    %61 = arith.cmpi eq, %59, %60 : vector<8x128xi32>
    %cst_21 = arith.constant 0.000000e+00 : f32
    %62 = vector.shape_cast %23 : vector<8x1xf32> to vector<8x1xf32>
    %63 = vector.broadcast %62 : vector<8x1xf32> to vector<8x128xf32>
    %64 = vector.broadcast %cst_21 : f32 to vector<8x128xf32>
    %65 = arith.select %61, %63, %64 : vector<8x128xi1>, vector<8x128xf32>
    %cst_22 = arith.constant dense<0.000000e+00> : vector<128xf32>
    %66 = vector.multi_reduction <add>, %65, %cst_22 [0] : vector<8x128xf32> to vector<128xf32>
    %67 = vector.shape_cast %66 : vector<128xf32> to vector<1x128xf32>
    %68 = tpu.iota {dimensions = array<i32: 1>} : vector<16x128xi32>
    %69 = vector.extract_strided_slice %5 {offsets = [0, 0], sizes = [16, 1], strides = [1, 1]} : vector<16x2xi32> to vector<16x1xi32>
    %70 = vector.extract_strided_slice %5 {offsets = [0, 1], sizes = [16, 1], strides = [1, 1]} : vector<16x2xi32> to vector<16x1xi32>
    %71 = vector.broadcast %69 : vector<16x1xi32> to vector<16x128xi32>
    %72 = arith.cmpi eq, %68, %71 : vector<16x128xi32>
    %cst_23 = arith.constant 0.000000e+00 : f32
    %73 = vector.shape_cast %67 : vector<1x128xf32> to vector<1x128xf32>
    %74 = vector.broadcast %73 : vector<1x128xf32> to vector<16x128xf32>
    %75 = vector.broadcast %cst_23 : f32 to vector<16x128xf32>
    %76 = arith.select %72, %74, %75 : vector<16x128xi1>, vector<16x128xf32>
    %cst_24 = arith.constant dense<0.000000e+00> : vector<16xf32>
    %77 = vector.multi_reduction <add>, %76, %cst_24 [1] : vector<16x128xf32> to vector<16xf32>
    %78 = vector.shape_cast %77 : vector<16xf32> to vector<16x1xf32>
    %79 = vector.broadcast %70 : vector<16x1xi32> to vector<16x128xi32>
    %80 = arith.cmpi eq, %68, %79 : vector<16x128xi32>
    %cst_25 = arith.constant 0.000000e+00 : f32
    %81 = vector.shape_cast %67 : vector<1x128xf32> to vector<1x128xf32>
    %82 = vector.broadcast %81 : vector<1x128xf32> to vector<16x128xf32>
    %83 = vector.broadcast %cst_25 : f32 to vector<16x128xf32>
    %84 = arith.select %80, %82, %83 : vector<16x128xi1>, vector<16x128xf32>
    %cst_26 = arith.constant dense<0.000000e+00> : vector<16xf32>
    %85 = vector.multi_reduction <add>, %84, %cst_26 [1] : vector<16x128xf32> to vector<16xf32>
    %86 = vector.shape_cast %85 : vector<16xf32> to vector<16x1xf32>
    %87 = arith.mulf %49, %78 : vector<16x1xf32>
    %88 = arith.mulf %87, %86 : vector<16x1xf32>
    %89 = arith.sitofp %29 : vector<8x1xi32> to vector<8x1xf32>
    %90 = tpu.iota {dimensions = array<i32: 0>} : vector<8x128xi32>
    %91 = tpu.iota {dimensions = array<i32: 1>} : vector<8x128xi32>
    %92 = arith.cmpi eq, %90, %91 : vector<8x128xi32>
    %cst_27 = arith.constant 0.000000e+00 : f32
    %93 = vector.shape_cast %89 : vector<8x1xf32> to vector<8x1xf32>
    %94 = vector.broadcast %93 : vector<8x1xf32> to vector<8x128xf32>
    %95 = vector.broadcast %cst_27 : f32 to vector<8x128xf32>
    %96 = arith.select %92, %94, %95 : vector<8x128xi1>, vector<8x128xf32>
    %cst_28 = arith.constant dense<0.000000e+00> : vector<128xf32>
    %97 = vector.multi_reduction <add>, %96, %cst_28 [0] : vector<8x128xf32> to vector<128xf32>
    %98 = vector.shape_cast %97 : vector<128xf32> to vector<1x128xf32>
    %99 = arith.sitofp %55 : vector<16x1xi32> to vector<16x1xf32>
    %100 = tpu.iota {dimensions = array<i32: 0>} : vector<16x128xi32>
    %101 = tpu.iota {dimensions = array<i32: 1>} : vector<16x128xi32>
    %102 = arith.cmpi eq, %100, %101 : vector<16x128xi32>
    %cst_29 = arith.constant 0.000000e+00 : f32
    %103 = vector.shape_cast %99 : vector<16x1xf32> to vector<16x1xf32>
    %104 = vector.broadcast %103 : vector<16x1xf32> to vector<16x128xf32>
    %105 = vector.broadcast %cst_29 : f32 to vector<16x128xf32>
    %106 = arith.select %102, %104, %105 : vector<16x128xi1>, vector<16x128xf32>
    %cst_30 = arith.constant dense<0.000000e+00> : vector<128xf32>
    %107 = vector.multi_reduction <add>, %106, %cst_30 [0] : vector<16x128xf32> to vector<128xf32>
    %108 = vector.shape_cast %107 : vector<128xf32> to vector<1x128xf32>
    %109 = tpu.iota {dimensions = array<i32: 0>} : vector<16x128xi32>
    %110 = tpu.iota {dimensions = array<i32: 1>} : vector<16x128xi32>
    %111 = arith.cmpi eq, %109, %110 : vector<16x128xi32>
    %cst_31 = arith.constant 0.000000e+00 : f32
    %112 = vector.shape_cast %88 : vector<16x1xf32> to vector<16x1xf32>
    %113 = vector.broadcast %112 : vector<16x1xf32> to vector<16x128xf32>
    %114 = vector.broadcast %cst_31 : f32 to vector<16x128xf32>
    %115 = arith.select %111, %113, %114 : vector<16x128xi1>, vector<16x128xf32>
    %cst_32 = arith.constant dense<0.000000e+00> : vector<128xf32>
    %116 = vector.multi_reduction <add>, %115, %cst_32 [0] : vector<16x128xf32> to vector<128xf32>
    %117 = vector.shape_cast %116 : vector<128xf32> to vector<1x128xf32>
    %118 = tpu.iota {dimensions = array<i32: 0>} : vector<8x128xi32>
    %c0_i32_33 = arith.constant 0 : i32
    %119 = vector.broadcast %c0_i32_33 : i32 to vector<8x128xi32>
    %120 = arith.cmpi eq, %118, %119 : vector<8x128xi32>
    %cst_34 = arith.constant 0.000000e+00 : f32
    %121 = vector.shape_cast %67 : vector<1x128xf32> to vector<1x128xf32>
    %122 = vector.broadcast %121 : vector<1x128xf32> to vector<8x128xf32>
    %123 = vector.broadcast %cst_34 : f32 to vector<8x128xf32>
    %124 = arith.select %120, %122, %123 : vector<8x128xi1>, vector<8x128xf32>
    %c1_i32 = arith.constant 1 : i32
    %125 = vector.broadcast %c1_i32 : i32 to vector<8x128xi32>
    %126 = arith.cmpi eq, %118, %125 : vector<8x128xi32>
    %cst_35 = arith.constant 0.000000e+00 : f32
    %127 = vector.shape_cast %98 : vector<1x128xf32> to vector<1x128xf32>
    %128 = vector.broadcast %127 : vector<1x128xf32> to vector<8x128xf32>
    %129 = vector.broadcast %cst_35 : f32 to vector<8x128xf32>
    %130 = arith.select %126, %128, %129 : vector<8x128xi1>, vector<8x128xf32>
    %131 = arith.addf %124, %130 : vector<8x128xf32>
    %c2_i32 = arith.constant 2 : i32
    %132 = vector.broadcast %c2_i32 : i32 to vector<8x128xi32>
    %133 = arith.cmpi eq, %118, %132 : vector<8x128xi32>
    %cst_36 = arith.constant 0.000000e+00 : f32
    %134 = vector.shape_cast %108 : vector<1x128xf32> to vector<1x128xf32>
    %135 = vector.broadcast %134 : vector<1x128xf32> to vector<8x128xf32>
    %136 = vector.broadcast %cst_36 : f32 to vector<8x128xf32>
    %137 = arith.select %133, %135, %136 : vector<8x128xi1>, vector<8x128xf32>
    %138 = arith.addf %131, %137 : vector<8x128xf32>
    %c3_i32 = arith.constant 3 : i32
    %139 = vector.broadcast %c3_i32 : i32 to vector<8x128xi32>
    %140 = arith.cmpi eq, %118, %139 : vector<8x128xi32>
    %cst_37 = arith.constant 0.000000e+00 : f32
    %141 = vector.shape_cast %117 : vector<1x128xf32> to vector<1x128xf32>
    %142 = vector.broadcast %141 : vector<1x128xf32> to vector<8x128xf32>
    %143 = vector.broadcast %cst_37 : f32 to vector<8x128xf32>
    %144 = arith.select %140, %142, %143 : vector<8x128xi1>, vector<8x128xf32>
    %145 = arith.addf %138, %144 : vector<8x128xf32>
    %c0_38 = arith.constant 0 : index
    %c0_39 = arith.constant 0 : index
    %c0_40 = arith.constant 0 : index
    %146 = vector.load %arg5[%c0_38, %c0_39, %c0_40] : memref<1x8x128xf32, #tpu.memory_space<vmem>>, vector<1x8x128xf32>
    %147 = vector.shape_cast %146 : vector<1x8x128xf32> to vector<8x128xf32>
    %148 = vector.shape_cast %145 : vector<8x128xf32> to vector<1x8x128xf32>
    tpu.vector_store %arg5[%c0_38, %c0_39, %c0_40], %148 {strides = array<i32>} : memref<1x8x128xf32, #tpu.memory_space<vmem>>, vector<1x8x128xf32>,
    %c0_41 = arith.constant 0 : index
    %c0_42 = arith.constant 0 : index
    %c0_43 = arith.constant 0 : index
    %149 = vector.load %arg4[%c0_41, %c0_42, %c0_43] : memref<1x8x8xf32, #tpu.memory_space<vmem>>, vector<1x8x8xf32>
    %150 = vector.shape_cast %149 : vector<1x8x8xf32> to vector<8x8xf32>
    %151 = arith.negf %150 : vector<8x8xf32>
    %152 = math.exp %151 : vector<8x8xf32>
    %cst_44 = arith.constant 1.000000e+00 : f32
    %153 = vector.broadcast %cst_44 : f32 to vector<8x8xf32>
    %154 = arith.addf %153, %152 : vector<8x8xf32>
    %155 = arith.divf %153, %154 : vector<8x8xf32>
    %c0_45 = arith.constant 0 : index
    %c0_46 = arith.constant 0 : index
    %c0_47 = arith.constant 0 : index
    %156 = vector.load %arg7[%c0_45, %c0_46, %c0_47] : memref<1x8x8xf32, #tpu.memory_space<vmem>>, vector<1x8x8xf32>
    %157 = vector.shape_cast %156 : vector<1x8x8xf32> to vector<8x8xf32>
    %158 = vector.shape_cast %155 : vector<8x8xf32> to vector<1x8x8xf32>
    tpu.vector_store %arg7[%c0_45, %c0_46, %c0_47], %158 {strides = array<i32>} : memref<1x8x8xf32, #tpu.memory_space<vmem>>, vector<1x8x8xf32>,
    return
  }
  func.func @transform_0(%arg0: i32) -> (i32, i32, i32) {
    %c0_i32 = arith.constant 0 : i32
    %c0_i32_0 = arith.constant 0 : i32
    %c0_i32_1 = arith.constant 0 : i32
    return %arg0, %c0_i32, %c0_i32_0 : i32, i32, i32
  }
  func.func @transform_1(%arg0: i32) -> (i32, i32, i32) {
    %c0_i32 = arith.constant 0 : i32
    %c0_i32_0 = arith.constant 0 : i32
    %c0_i32_1 = arith.constant 0 : i32
    return %arg0, %c0_i32, %c0_i32_0 : i32, i32, i32
  }
  func.func @transform_2(%arg0: i32) -> (i32, i32, i32) {
    %c0_i32 = arith.constant 0 : i32
    %c0_i32_0 = arith.constant 0 : i32
    %c0_i32_1 = arith.constant 0 : i32
    return %arg0, %c0_i32, %c0_i32_0 : i32, i32, i32
  }
  func.func @transform_3(%arg0: i32) -> (i32, i32, i32) {
    %c0_i32 = arith.constant 0 : i32
    %c0_i32_0 = arith.constant 0 : i32
    %c0_i32_1 = arith.constant 0 : i32
    return %arg0, %c0_i32, %c0_i32_0 : i32, i32, i32
  }
  func.func @transform_4(%arg0: i32) -> (i32, i32, i32) {
    %c0_i32 = arith.constant 0 : i32
    %c0_i32_0 = arith.constant 0 : i32
    %c0_i32_1 = arith.constant 0 : i32
    return %arg0, %c0_i32, %c0_i32_0 : i32, i32, i32
  }
  func.func @transform_5(%arg0: i32) -> (i32, i32, i32) {
    %c0_i32 = arith.constant 0 : i32
    %c0_i32_0 = arith.constant 0 : i32
    %c0_i32_1 = arith.constant 0 : i32
    return %arg0, %c0_i32, %c0_i32_0 : i32, i32, i32
  }
  func.func @transform_6(%arg0: i32) -> (i32, i32, i32) {
    %c0_i32 = arith.constant 0 : i32
    %c0_i32_0 = arith.constant 0 : i32
    %c0_i32_1 = arith.constant 0 : i32
    return %arg0, %c0_i32, %c0_i32_0 : i32, i32, i32
  }
}

</mosaic_0001>

<llo_original>
// kernel: tpu_custom_call.1
$region0: #{tpu_custom_call.1}
  #allocation0 [shape = 'u32[]', space=smem, size = 0x4, offset = 0x4, fixed_abs, tag = 'smem constant byte address 0x4 - core index']
  #allocation1 [shape = 'u32[144,128]{1,0:T(1,128)}', space=vmem, size = 0x12000, scoped, tag = 'internal scratch']
  %s0 = inlined_call_operand.hbm [shape: f32[2,8,32], index: 0, kind: input, shape index: {}]
  %s1 = inlined_call_operand.vmem [shape: f32[2,16,16], index: 1, kind: input, shape index: {}]
  %s2 = inlined_call_operand.vmem [shape: s32[2,16,2], index: 2, kind: input, shape index: {}]
  %s3 = inlined_call_operand.hbm [shape: f32[2,8,8], index: 3, kind: input, shape index: {}]
  %s4 = inlined_call_operand.hbm [shape: f32[2,8,128], index: 4, kind: output, shape index: {0}]
  %s5 = inlined_call_operand.hbm [shape: f32[2,16,16], index: 5, kind: output, shape index: {1}]
  %s6 = inlined_call_operand.hbm [shape: f32[2,8,8], index: 6, kind: output, shape index: {2}]
  %7 = xla_tuple %s4, %s5, %s6
  %s8 = sld [smem:[#allocation0]]
  $region73: #{tpu_custom_call.1} parent=0
    _
  %s10 = ssub.s32 1, %s8
  %s11 = scalar_select 0, %s10, %s8
  $region1: #{tpu_custom_call.1} parent=0
    #allocation2 [shape = 'u8[8192]{0}', space=vmem, size = 0x2000, scoped, tag = 'input window, operand 0']
    #allocation3 [shape = 's32[2]{0}', space=sflag, size = 0x8, scoped, tag = 'scoped memory for tpu_custom_call.1']
    #allocation4 [shape = 's32[2]{0}', space=sflag, size = 0x8, scoped, tag = 'scoped memory for tpu_custom_call.1']
    #allocation5 [shape = 'u8[8192]{0}', space=vmem, size = 0x2000, scoped, tag = 'input window, operand 3']
    #allocation6 [shape = 's32[2]{0}', space=sflag, size = 0x8, scoped, tag = 'scoped memory for tpu_custom_call.1']
    #allocation7 [shape = 'u8[8192]{0}', space=vmem, size = 0x2000, scoped, tag = 'output window, operand 0']
    #allocation8 [shape = 'u8[16384]{0}', space=vmem, size = 0x4000, scoped, tag = 'output window, operand 1']
    #allocation9 [shape = 's32[2]{0}', space=sflag, size = 0x8, scoped, tag = 'scoped memory for tpu_custom_call.1']
    #allocation10 [shape = 'u8[8192]{0}', space=vmem, size = 0x2000, scoped, tag = 'output window, operand 2']
    %12 = vsyncpa [#allocation3], 0
    %s13 = scalar_lea.sflag [#allocation3], 1
    %14 = vsyncpa %s13, 0
    %15 = vsyncpa [#allocation6], 0
    %s16 = scalar_lea.sflag [#allocation6], 1
    %17 = vsyncpa %s16, 0
    %18 = vsyncpa [#allocation4], 0
    %s19 = scalar_lea.sflag [#allocation4], 1
    %20 = vsyncpa %s19, 0
    %21 = vsyncpa [#allocation9], 0
    %s22 = scalar_lea.sflag [#allocation9], 1
    %23 = vsyncpa %s22, 0
    loop: start=0, step=1, limit=4
    $region2: #{tpu_custom_call.1} parent=1 // loop_pre_header
      _
    $region3: #{tpu_custom_call.1} parent=1 // loop_header
      %s25 = sphi 0, %s29
      %p26 = scmp.ge.s32.totalorder %s25, 4
      %s35 = sphi 0, %s37
      %s38 = sphi 0, %s35
      %s39 = sphi 0, %s38
      %s55 = sphi 0, %s39
      %s61 = sphi 0, %s63
      %s64 = sphi 0, %s61
      %s65 = sphi 0, %s64
      %s81 = sphi 0, %s65
      %s87 = sphi 0, %s89
      %s90 = sphi 0, %s87
      %s91 = sphi 0, %s90
      %s107 = sphi 0, %s91
      %s113 = sphi 0, %s115
      %s116 = sphi 0, %s113
      %s117 = sphi 0, %s116
      %s133 = sphi 0, %s117
      %s139 = sphi 0, %s141
      %s142 = sphi 0, %s139
      %s143 = sphi 0, %s142
      %s159 = sphi 0, %s143
      %s165 = sphi 0, %s167
      %s168 = sphi 0, %s165
      %s169 = sphi 0, %s168
      %s185 = sphi 0, %s169
      %s191 = sphi 0, %s193
      %s194 = sphi 0, %s191
      %s195 = sphi 0, %s194
      %s211 = sphi 0, %s195
    $region4: #{tpu_custom_call.1} parent=1 // loop_header_branch
      %28 = sbr.rel (%p26) target = $region8
    $region5: #{tpu_custom_call.1} parent=1 // loop_body
      %s30 = ssub.s32 %s25, 1
      %s31 = ssub.s32 %s25, 2
      %s32 = sadd.s32 %s25, 1
      %s33 = ssub.s32 %s25, %s32
      %p34 = scmp.eq.s32.totalorder %s33, 0
      %s36 = sadd.s32 %s35, 1
      %s37 = scalar_select %p34, %s35, %s36
      %p40 = pneg %p34
      %p41 = scmp.eq.s32.totalorder %s25, 1
      %p42 = por %p40, %p41
      %p43 = scmp.ne.s32.totalorder %s35, %s38
      %p44 = scmp.eq.s32.totalorder %s25, 0
      %p45 = por %p43, %p44
      %p46 = scmp.ne.s32.totalorder %s35, %s38
      %p47 = scmp.eq.s32.totalorder %s30, 1
      %p48 = por %p46, %p47
      %p49 = scmp.ne.s32.totalorder %s38, %s39
      %p50 = scmp.eq.s32.totalorder %s30, 0
      %p51 = por %p49, %p50
      %p52 = scmp.ne.s32.totalorder %s38, %s39
      %p53 = scmp.eq.s32.totalorder %s31, 1
      %p54 = por %p52, %p53
      %p56 = scmp.ne.s32.totalorder %s39, %s55
      %p57 = scmp.eq.s32.totalorder %s31, 0
      %p58 = por %p56, %p57
      %s59 = ssub.s32 %s25, %s32
      %p60 = scmp.eq.s32.totalorder %s59, 0
      %s62 = sadd.s32 %s61, 1
      %s63 = scalar_select %p60, %s61, %s62
      %p66 = pneg %p60
      %p67 = scmp.eq.s32.totalorder %s25, 1
      %p68 = por %p66, %p67
      %p69 = scmp.ne.s32.totalorder %s61, %s64
      %p70 = scmp.eq.s32.totalorder %s25, 0
      %p71 = por %p69, %p70
      %p72 = scmp.ne.s32.totalorder %s61, %s64
      %p73 = scmp.eq.s32.totalorder %s30, 1
      %p74 = por %p72, %p73
      %p75 = scmp.ne.s32.totalorder %s64, %s65
      %p76 = scmp.eq.s32.totalorder %s30, 0
      %p77 = por %p75, %p76
      %p78 = scmp.ne.s32.totalorder %s64, %s65
      %p79 = scmp.eq.s32.totalorder %s31, 1
      %p80 = por %p78, %p79
      %p82 = scmp.ne.s32.totalorder %s65, %s81
      %p83 = scmp.eq.s32.totalorder %s31, 0
      %p84 = por %p82, %p83
      %s85 = ssub.s32 %s25, %s32
      %p86 = scmp.eq.s32.totalorder %s85, 0
      %s88 = sadd.s32 %s87, 1
      %s89 = scalar_select %p86, %s87, %s88
      %p92 = pneg %p86
      %p93 = scmp.eq.s32.totalorder %s25, 1
      %p94 = por %p92, %p93
      %p95 = scmp.ne.s32.totalorder %s87, %s90
      %p96 = scmp.eq.s32.totalorder %s25, 0
      %p97 = por %p95, %p96
      %p98 = scmp.ne.s32.totalorder %s87, %s90
      %p99 = scmp.eq.s32.totalorder %s30, 1
      %p100 = por %p98, %p99
      %p101 = scmp.ne.s32.totalorder %s90, %s91
      %p102 = scmp.eq.s32.totalorder %s30, 0
      %p103 = por %p101, %p102
      %p104 = scmp.ne.s32.totalorder %s90, %s91
      %p105 = scmp.eq.s32.totalorder %s31, 1
      %p106 = por %p104, %p105
      %p108 = scmp.ne.s32.totalorder %s91, %s107
      %p109 = scmp.eq.s32.totalorder %s31, 0
      %p110 = por %p108, %p109
      %s111 = ssub.s32 %s25, %s32
      %p112 = scmp.eq.s32.totalorder %s111, 0
      %s114 = sadd.s32 %s113, 1
      %s115 = scalar_select %p112, %s113, %s114
      %p118 = pneg %p112
      %p119 = scmp.eq.s32.totalorder %s25, 1
      %p120 = por %p118, %p119
      %p121 = scmp.ne.s32.totalorder %s113, %s116
      %p122 = scmp.eq.s32.totalorder %s25, 0
      %p123 = por %p121, %p122
      %p124 = scmp.ne.s32.totalorder %s113, %s116
      %p125 = scmp.eq.s32.totalorder %s30, 1
      %p126 = por %p124, %p125
      %p127 = scmp.ne.s32.totalorder %s116, %s117
      %p128 = scmp.eq.s32.totalorder %s30, 0
      %p129 = por %p127, %p128
      %p130 = scmp.ne.s32.totalorder %s116, %s117
      %p131 = scmp.eq.s32.totalorder %s31, 1
      %p132 = por %p130, %p131
      %p134 = scmp.ne.s32.totalorder %s117, %s133
      %p135 = scmp.eq.s32.totalorder %s31, 0
      %p136 = por %p134, %p135
      %s137 = ssub.s32 %s25, %s32
      %p138 = scmp.eq.s32.totalorder %s137, 0
      %s140 = sadd.s32 %s139, 1
      %s141 = scalar_select %p138, %s139, %s140
      %p144 = pneg %p138
      %p145 = scmp.eq.s32.totalorder %s25, 1
      %p146 = por %p144, %p145
      %p147 = scmp.ne.s32.totalorder %s139, %s142
      %p148 = scmp.eq.s32.totalorder %s25, 0
      %p149 = por %p147, %p148
      %p150 = scmp.ne.s32.totalorder %s139, %s142
      %p151 = scmp.eq.s32.totalorder %s30, 1
      %p152 = por %p150, %p151
      %p153 = scmp.ne.s32.totalorder %s142, %s143
      %p154 = scmp.eq.s32.totalorder %s30, 0
      %p155 = por %p153, %p154
      %p156 = scmp.ne.s32.totalorder %s142, %s143
      %p157 = scmp.eq.s32.totalorder %s31, 1
      %p158 = por %p156, %p157
      %p160 = scmp.ne.s32.totalorder %s143, %s159
      %p161 = scmp.eq.s32.totalorder %s31, 0
      %p162 = por %p160, %p161
      %s163 = ssub.s32 %s25, %s32
      %p164 = scmp.eq.s32.totalorder %s163, 0
      %s166 = sadd.s32 %s165, 1
      %s167 = scalar_select %p164, %s165, %s166
      %p170 = pneg %p164
      %p171 = scmp.eq.s32.totalorder %s25, 1
      %p172 = por %p170, %p171
      %p173 = scmp.ne.s32.totalorder %s165, %s168
      %p174 = scmp.eq.s32.totalorder %s25, 0
      %p175 = por %p173, %p174
      %p176 = scmp.ne.s32.totalorder %s165, %s168
      %p177 = scmp.eq.s32.totalorder %s30, 1
      %p178 = por %p176, %p177
      %p179 = scmp.ne.s32.totalorder %s168, %s169
      %p180 = scmp.eq.s32.totalorder %s30, 0
      %p181 = por %p179, %p180
      %p182 = scmp.ne.s32.totalorder %s168, %s169
      %p183 = scmp.eq.s32.totalorder %s31, 1
      %p184 = por %p182, %p183
      %p186 = scmp.ne.s32.totalorder %s169, %s185
      %p187 = scmp.eq.s32.totalorder %s31, 0
      %p188 = por %p186, %p187
      %s189 = ssub.s32 %s25, %s32
      %p190 = scmp.eq.s32.totalorder %s189, 0
      %s192 = sadd.s32 %s191, 1
      %s193 = scalar_select %p190, %s191, %s192
      %p196 = pneg %p190
      %p197 = scmp.eq.s32.totalorder %s25, 1
      %p198 = por %p196, %p197
      %p199 = scmp.ne.s32.totalorder %s191, %s194
      %p200 = scmp.eq.s32.totalorder %s25, 0
      %p201 = por %p199, %p200
      %p202 = scmp.ne.s32.totalorder %s191, %s194
      %p203 = scmp.eq.s32.totalorder %s30, 1
      %p204 = por %p202, %p203
      %p205 = scmp.ne.s32.totalorder %s194, %s195
      %p206 = scmp.eq.s32.totalorder %s30, 0
      %p207 = por %p205, %p206
      %p208 = scmp.ne.s32.totalorder %s194, %s195
      %p209 = scmp.eq.s32.totalorder %s31, 1
      %p210 = por %p208, %p209
      %p212 = scmp.ne.s32.totalorder %s195, %s211
      %p213 = scmp.eq.s32.totalorder %s31, 0
      %p214 = por %p212, %p213
      %p215 = scmp.le.s32.totalorder 1, %s25
      %p216 = scmp.lt.s32.totalorder %s25, 3
      %p217 = pnand %p215, %p216
      %p218 = pneg %p217
      // Predicated region
      $region9: #{tpu_custom_call.1} parent=5 // pred_check
        _
      $region10: #{tpu_custom_call.1} parent=5 // pred_check_branch
        %220 = sbr.rel (%p217) target = $region12
      $region11: #{tpu_custom_call.1} parent=5 // pred_region
        %s221 = ssub.s32 %s25, 1
      $region12: #{tpu_custom_call.1} parent=5 // pred_fallthru
        _
      %p222 = scmp.lt.s32.totalorder %s25, 2
      // Predicated region
      $region13: #{tpu_custom_call.1} parent=5 // pred_check
        %p223 = pneg %p222
      $region14: #{tpu_custom_call.1} parent=5 // pred_check_branch
        %225 = sbr.rel (%p223) target = $region16
      $region15: #{tpu_custom_call.1} parent=5 // pred_region
        // Predicated region
        $region17: #{tpu_custom_call.1} parent=15 // pred_check
          %p226 = pneg %p45
        $region18: #{tpu_custom_call.1} parent=15 // pred_check_branch
          %228 = sbr.rel (%p226) target = $region20
        $region19: #{tpu_custom_call.1} parent=15 // pred_region
          %s229 = sand.u32 %s35, 1
          %s230 = scalar_lea.sflag [#allocation3], %s229
          %s231 = sand.u32 %s35, 1
          %s232 = smul.addr %s231, 8
          %s233 = scalar_lea.vmem [#allocation2], %s232
          %s235 = ssub.s32 128, 128
          %236 = vsyncadd %s230, %s235
          %s237 = smul.addr %s25, 128
          %s238 = scalar_lea.hbm %s0, %s237
          %s240 = sshll.u32 %s233, 4
          %s241 = int_to_ptr.vmem [resolvable:$true] %s240
          %243 = dma.hbm_to_vmem [thread:$0]  %s238, 128, %s241, %s230
        $region20: #{tpu_custom_call.1} parent=15 // pred_fallthru
          _
        // Predicated region
        $region21: #{tpu_custom_call.1} parent=15 // pred_check
          %p244 = pneg %p71
        $region22: #{tpu_custom_call.1} parent=15 // pred_check_branch
          %246 = sbr.rel (%p244) target = $region24
        $region23: #{tpu_custom_call.1} parent=15 // pred_region
          %p247 = scmp.lt.s32.totalorder %s25, 1
          %s248 = scalar_select %p247, %s25, 1
          %s249 = smul.addr %s248, 2
          %s250 = smul.addr %s249, 8
          %s251 = scalar_lea.vmem %s1, %s250
        $region24: #{tpu_custom_call.1} parent=15 // pred_fallthru
          _
        // Predicated region
        $region25: #{tpu_custom_call.1} parent=15 // pred_check
          %p252 = pneg %p97
        $region26: #{tpu_custom_call.1} parent=15 // pred_check_branch
          %254 = sbr.rel (%p252) target = $region28
        $region27: #{tpu_custom_call.1} parent=15 // pred_region
          %p255 = scmp.lt.s32.totalorder %s25, 1
          %s256 = scalar_select %p255, %s25, 1
          %s257 = smul.addr %s256, 2
          %s258 = smul.addr %s257, 8
          %s259 = scalar_lea.vmem %s2, %s258
        $region28: #{tpu_custom_call.1} parent=15 // pred_fallthru
          _
        // Predicated region
        $region29: #{tpu_custom_call.1} parent=15 // pred_check
          %p260 = pneg %p123
        $region30: #{tpu_custom_call.1} parent=15 // pred_check_branch
          %262 = sbr.rel (%p260) target = $region32
        $region31: #{tpu_custom_call.1} parent=15 // pred_region
          %s263 = sand.u32 %s113, 1
          %s264 = scalar_lea.sflag [#allocation6], %s263
          %s265 = sand.u32 %s113, 1
          %s266 = smul.addr %s265, 8
          %s267 = scalar_lea.vmem [#allocation5], %s266
          %s269 = ssub.s32 128, 128
          %270 = vsyncadd %s264, %s269
          %s271 = smul.addr %s25, 128
          %s272 = scalar_lea.hbm %s3, %s271
          %s274 = sshll.u32 %s267, 4
          %s275 = int_to_ptr.vmem [resolvable:$true] %s274
          %277 = dma.hbm_to_vmem [thread:$0]  %s272, 128, %s275, %s264
        $region32: #{tpu_custom_call.1} parent=15 // pred_fallthru
          _
      $region16: #{tpu_custom_call.1} parent=5 // pred_fallthru
        _
      %p278 = scmp.le.s32.totalorder 1, %s25
      %p279 = scmp.lt.s32.totalorder %s25, 3
      %p280 = pnand %p278, %p279
      %p281 = pneg %p280
      // Predicated region
      $region33: #{tpu_custom_call.1} parent=5 // pred_check
        _
      $region34: #{tpu_custom_call.1} parent=5 // pred_check_branch
        %283 = sbr.rel (%p280) target = $region36
      $region35: #{tpu_custom_call.1} parent=5 // pred_region
        %s284 = ssub.s32 %s25, 1
        %s285 = sand.u32 %s38, 1
        %s286 = scalar_lea.sflag [#allocation3], %s285
        %s287 = sand.u32 %s38, 1
        %s288 = smul.addr %s287, 8
        %s289 = scalar_lea.vmem [#allocation2], %s288
        // Predicated region
        $region37: #{tpu_custom_call.1} parent=35 // pred_check
          %p290 = pneg %p51
        $region38: #{tpu_custom_call.1} parent=35 // pred_check_branch
          %292 = sbr.rel (%p290) target = $region40
        $region39: #{tpu_custom_call.1} parent=35 // pred_region
          %293 = dma.done %s286, 128
        $region40: #{tpu_custom_call.1} parent=35 // pred_fallthru
          _
        %s294 = sand.u32 %s116, 1
        %s295 = scalar_lea.sflag [#allocation6], %s294
        %s296 = sand.u32 %s116, 1
        %s297 = smul.addr %s296, 8
        %s298 = scalar_lea.vmem [#allocation5], %s297
        // Predicated region
        $region41: #{tpu_custom_call.1} parent=35 // pred_check
          %p299 = pneg %p129
        $region42: #{tpu_custom_call.1} parent=35 // pred_check_branch
          %301 = sbr.rel (%p299) target = $region44
        $region43: #{tpu_custom_call.1} parent=35 // pred_region
          %302 = dma.done %s295, 128
        $region44: #{tpu_custom_call.1} parent=35 // pred_fallthru
          _
        %s303 = sand.u32 %s38, 1
        %s304 = scalar_lea.sflag [#allocation3], %s303
        %s305 = sand.u32 %s38, 1
        %s306 = smul.addr %s305, 8
        %s307 = scalar_lea.vmem [#allocation2], %s306
        %p308 = pneg %p51
        %p309 = pneg %p48
        %p310 = scmp.lt.s32.totalorder %s30, 1
        %s311 = scalar_select %p310, %s30, 1
        %s312 = smul.addr %s311, 2
        %s313 = smul.addr %s312, 8
        %s314 = scalar_lea.vmem %s1, %s313
        %p315 = pneg %p77
        %p316 = pneg %p74
        %p317 = scmp.lt.s32.totalorder %s30, 1
        %s318 = scalar_select %p317, %s30, 1
        %s319 = smul.addr %s318, 2
        %s320 = smul.addr %s319, 8
        %s321 = scalar_lea.vmem %s2, %s320
        %p322 = pneg %p103
        %p323 = pneg %p100
        %s324 = sand.u32 %s116, 1
        %s325 = scalar_lea.sflag [#allocation6], %s324
        %s326 = sand.u32 %s116, 1
        %s327 = smul.addr %s326, 8
        %s328 = scalar_lea.vmem [#allocation5], %s327
        %p329 = pneg %p129
        %p330 = pneg %p126
        %p331 = pneg %p155
        %p332 = pneg %p152
        %s333 = sand.u32 %s142, 1
        %s334 = scalar_lea.sflag [#allocation4], %s333
        %s335 = sand.u32 %s142, 1
        %s336 = smul.addr %s335, 8
        %s337 = scalar_lea.vmem [#allocation7], %s336
        %p338 = pneg %p181
        %p339 = pneg %p178
        %s340 = sand.u32 %s30, 1
        %s341 = scalar_lea.sflag [#allocation9], %s340
        %s342 = sand.u32 %s168, 1
        %s343 = smul.addr %s342, 16
        %s344 = scalar_lea.vmem [#allocation8], %s343
        %p345 = pneg %p207
        %p346 = pneg %p204
        %s347 = sand.u32 %s30, 1
        %s348 = scalar_lea.sflag [#allocation9], %s347
        %s349 = sand.u32 %s194, 1
        %s350 = smul.addr %s349, 8
        %s351 = scalar_lea.vmem [#allocation10], %s350
        %p352 = scmp.lt.s32.totalorder %s30, 1
        %s353 = scalar_select %p352, %s30, 1
        %s354 = smul.addr %s353, 2
        %s355 = smul.addr %s354, 8
        %s356 = scalar_lea.vmem %s1, %s355
        %p357 = scmp.lt.s32.totalorder %s30, 1
        %s358 = scalar_select %p357, %s30, 1
        %s359 = smul.addr %s358, 2
        %s360 = smul.addr %s359, 8
        %s361 = scalar_lea.vmem %s2, %s360
        %v362 = vld [vmem:[%s289] sm:$0xff]
        %v363 = vld [vmem:[%s356] sm:$0xff]
        %v364 = vld [vmem:[%s356 + $0x8] sm:$0xff]
        %v365 = vld [vmem:[%s361] sm:$0xff]
        %v366 = vld [vmem:[%s361 + $0x8] sm:$0xff]
        %v367 = vlaneseq
        %v368 = vand.u32 %v367, 127
        %vm369 = vcmask 261120
        %v370 = vsel %vm369, %v362, -inf
        %371 = vmax.xlane.f32.xlu0 %v370
        %v372 = vpop.xlane.xlu0 %371
        %v373 = vsub.f32 %v362, %v372
        %v374 = vmul.f32 %v373, 1.442695
        %v375 = vpow.pop %v374
        %v376 = vsel %vm369, %v375, 0.0
        %377 = vadd.xlane.f32.xlu0 %v376
        %v378 = vpop.xlane.xlu0 %377
        %v379 = vrcp.pop %v378
        %vm380 = vcmp.eq.s32.totalorder %v368, 0
        %v381 = vsel %vm380, -inf, %v362
        %v382 = vsel %vm369, %v381, -inf
        %383 = vmax.xlane.f32.xlu0 %v382
        %v384 = vpop.xlane.xlu0 %383
        %v385 = vsub.f32 %v384, %v372
        %v386 = vmul.f32 %v385, 1.442695
        %v387 = vpow.pop %v386
        %v388 = vmul.f32 %v387, %v379
        %vm389 = vcmp.eq.f32.partialorder %v381, %v384
        %v390 = vsel %vm389, %v368, 32
        %v391 = vsel %vm369, %v390, 2147483647
        %v392 = vand.u32 %v391, 65535
        %v393 = vshra.s32 %v391, 16
        %v394 = vcvt.s32.f32 %v392
        %v395 = vcvt.s32.f32 %v393
        %396 = vmin.xlane.f32.xlu0 %v395
        %v397 = vpop.xlane.xlu0 %396
        %vm398 = vcmp.eq.f32.partialorder %v395, %v397
        %v399 = vsel %vm398, %v394, inf
        %400 = vmin.xlane.f32.xlu0 %v399
        %v401 = vpop.xlane.xlu0 %400
        %v402 = vcvt.f32.s32 %v401
        %v403 = vcvt.f32.s32 %v397
        %v404 = vshll.u32 %v403, 16
        %v405 = vadd.s32 %v404, %v402
        %vm406 = vcmask 130048
        %v407 = vsel %vm406, %v363, -inf
        %408 = vmax.xlane.f32.xlu0 %v407
        %v409 = vpop.xlane.xlu0 %408
        %v410 = vsel %vm406, %v364, -inf
        %411 = vmax.xlane.f32.xlu0 %v410
        %v412 = vpop.xlane.xlu0 %411
        %v413 = vsub.f32 %v363, %v409
        %v414 = vsub.f32 %v364, %v412
        %v415 = vmul.f32 %v413, 1.442695
        %v416 = vpow.pop %v415
        %v417 = vmul.f32 %v414, 1.442695
        %v418 = vpow.pop %v417
        %v419 = vsel %vm406, %v416, 0.0
        %420 = vadd.xlane.f32.xlu0 %v419
        %v421 = vpop.xlane.xlu0 %420
        %v422 = vsel %vm406, %v418, 0.0
        %423 = vadd.xlane.f32.xlu0 %v422
        %v424 = vpop.xlane.xlu0 %423
        %v425 = vrcp.pop %v421
        %v426 = vrcp.pop %v424
        %v427 = vmul.f32 %v416, %v425
        %v428 = vmul.f32 %v418, %v426
        %v429 = vsel %vm380, -inf, %v363
        %v430 = vsel %vm380, -inf, %v364
        %v431 = vsel %vm406, %v429, -inf
        %432 = vmax.xlane.f32.xlu0 %v431
        %v433 = vpop.xlane.xlu0 %432
        %v434 = vsel %vm406, %v430, -inf
        %435 = vmax.xlane.f32.xlu0 %v434
        %v436 = vpop.xlane.xlu0 %435
        %v437 = vsub.f32 %v433, %v409
        %v438 = vsub.f32 %v436, %v412
        %v439 = vmul.f32 %v437, 1.442695
        %v440 = vpow.pop %v439
        %v441 = vmul.f32 %v438, 1.442695
        %v442 = vpow.pop %v441
        %v443 = vmul.f32 %v440, %v425
        %v444 = vmul.f32 %v442, %v426
        %vm445 = vcmp.eq.f32.partialorder %v429, %v433
        %vm446 = vcmp.eq.f32.partialorder %v430, %v436
        %v447 = vsel %vm445, %v368, 16
        %v448 = vsel %vm446, %v368, 16
        %v449 = vsel %vm406, %v447, 2147483647
        %v450 = vand.u32 %v449, 65535
        %v451 = vshra.s32 %v449, 16
        %v452 = vcvt.s32.f32 %v450
        %v453 = vcvt.s32.f32 %v451
        %454 = vmin.xlane.f32.xlu0 %v453
        %v455 = vpop.xlane.xlu0 %454
        %vm456 = vcmp.eq.f32.partialorder %v453, %v455
        %v457 = vsel %vm456, %v452, inf
        %458 = vmin.xlane.f32.xlu0 %v457
        %v459 = vpop.xlane.xlu0 %458
        %v460 = vcvt.f32.s32 %v459
        %v461 = vcvt.f32.s32 %v455
        %v462 = vshll.u32 %v461, 16
        %v463 = vadd.s32 %v462, %v460
        %v464 = vsel %vm406, %v448, 2147483647
        %v465 = vand.u32 %v464, 65535
        %v466 = vshra.s32 %v464, 16
        %v467 = vcvt.s32.f32 %v465
        %v468 = vcvt.s32.f32 %v466
        %469 = vmin.xlane.f32.xlu0 %v468
        %v470 = vpop.xlane.xlu0 %469
        %vm471 = vcmp.eq.f32.partialorder %v468, %v470
        %v472 = vsel %vm471, %v467, inf
        %473 = vmin.xlane.f32.xlu0 %v472
        %v474 = vpop.xlane.xlu0 %473
        %v475 = vcvt.f32.s32 %v474
        %v476 = vcvt.f32.s32 %v470
        %v477 = vshll.u32 %v476, 16
        %v478 = vadd.s32 %v477, %v475
        %479 = vst.msk [vmem:[%s344] sm:$0xff] %vm406, %v427
        %480 = vst.msk [vmem:[%s344 + $0x8] sm:$0xff] %vm406, %v428
        %v481 = vlaneseq
        %v482 = vshrl.u32 %v481, 7
        %vm483 = vcmp.eq.s32.totalorder %v482, %v368
        %v484 = vsel %vm483, %v388, 0.0
        %v485 = vrot.slane %v484, 4
        %v486 = vadd.f32 %v484, %v485
        %v487 = vrot.slane %v486, 2
        %v488 = vadd.f32 %v486, %v487
        %v489 = vrot.slane %v488, 1
        %v490 = vadd.f32 %v488, %v489
        %491 = vset.pattern.permute.xlu0 0
        %492 = vperm.xlu0 %491, %v365
        %v493 = vpop.permute.xlu0 %492
        %494 = vset.pattern.permute.xlu0 0
        %495 = vperm.xlu0 %494, %v366
        %v496 = vpop.permute.xlu0 %495
        %vm497 = vcmp.eq.s32.totalorder %v368, %v493
        %vm498 = vcmp.eq.s32.totalorder %v368, %v496
        %v499 = vsel %vm497, %v490, 0.0
        %v500 = vsel %vm498, %v490, 0.0
        %501 = vadd.xlane.f32.xlu0 %v499
        %v502 = vpop.xlane.xlu0 %501
        %503 = vadd.xlane.f32.xlu0 %v500
        %v504 = vpop.xlane.xlu0 %503
        %505 = vset.pattern.permute.xlu0 1
        %506 = vperm.xlu0 %505, %v365
        %v507 = vpop.permute.xlu0 %506
        %508 = vset.pattern.permute.xlu0 1
        %509 = vperm.xlu0 %508, %v366
        %v510 = vpop.permute.xlu0 %509
        %vm511 = vcmp.eq.s32.totalorder %v368, %v507
        %vm512 = vcmp.eq.s32.totalorder %v368, %v510
        %v513 = vsel %vm511, %v490, 0.0
        %v514 = vsel %vm512, %v490, 0.0
        %515 = vadd.xlane.f32.xlu0 %v513
        %v516 = vpop.xlane.xlu0 %515
        %517 = vadd.xlane.f32.xlu0 %v514
        %v518 = vpop.xlane.xlu0 %517
        %v519 = vmul.f32 %v443, %v502
        %v520 = vmul.f32 %v444, %v504
        %v521 = vmul.f32 %v519, %v516
        %v522 = vmul.f32 %v520, %v518
        %v523 = vcvt.s32.f32 %v405
        %v524 = vsel %vm483, %v523, 0.0
        %v525 = vrot.slane %v524, 4
        %v526 = vadd.f32 %v524, %v525
        %v527 = vrot.slane %v526, 2
        %v528 = vadd.f32 %v526, %v527
        %v529 = vrot.slane %v528, 1
        %v530 = vadd.f32 %v528, %v529
        %v531 = vcvt.s32.f32 %v463
        %v532 = vcvt.s32.f32 %v478
        %v533 = vadd.s32 %v482, 8
        %vm534 = vcmp.eq.s32.totalorder %v533, %v368
        %v535 = vsel %vm483, %v531, 0.0
        %v536 = vsel %vm534, %v532, 0.0
        %v537 = vadd.f32 %v535, %v536
        %v538 = vrot.slane %v537, 4
        %v539 = vadd.f32 %v537, %v538
        %v540 = vrot.slane %v539, 2
        %v541 = vadd.f32 %v539, %v540
        %v542 = vrot.slane %v541, 1
        %v543 = vadd.f32 %v541, %v542
        %v544 = vsel %vm483, %v521, 0.0
        %v545 = vsel %vm534, %v522, 0.0
        %v546 = vadd.f32 %v544, %v545
        %v547 = vrot.slane %v546, 4
        %v548 = vadd.f32 %v546, %v547
        %v549 = vrot.slane %v548, 2
        %v550 = vadd.f32 %v548, %v549
        %v551 = vrot.slane %v550, 1
        %v552 = vadd.f32 %v550, %v551
        %vm553 = vcmp.eq.s32.totalorder %v482, 0
        %v554 = vsel %vm553, %v490, 0.0
        %vm555 = vcmp.eq.s32.totalorder %v482, 1
        %v556 = vsel %vm555, %v530, 0.0
        %v557 = vadd.f32 %v554, %v556
        %vm558 = vcmp.eq.s32.totalorder %v482, 2
        %v559 = vsel %vm558, %v543, 0.0
        %v560 = vadd.f32 %v557, %v559
        %vm561 = vcmp.eq.s32.totalorder %v482, 3
        %v562 = vsel %vm561, %v552, 0.0
        %v563 = vadd.f32 %v560, %v562
        %564 = vst [vmem:[%s337] sm:$0xff] %v563
        %v565 = vld [vmem:[%s298] sm:$0xff]
        %v566 = vxor.u32 %v565, 2147483648
        %v567 = vmul.f32 %v566, 1.442695
        %v568 = vpow.pop %v567
        %v569 = vadd.f32 %v568, 1.0
        %v570 = vrcp.pop %v569
        %v571 = vmul.f32 1.0, %v570
        %vm572 = vcmask 64512
        %573 = vst.msk [vmem:[%s351] sm:$0xff] %vm572, %v571
        %s574 = sand.u32 %s142, 1
        %s575 = scalar_lea.sflag [#allocation4], %s574
        %s576 = sand.u32 %s142, 1
        %s577 = smul.addr %s576, 8
        %s578 = scalar_lea.vmem [#allocation7], %s577
        %s579 = sand.u32 %s30, 1
        %s580 = scalar_lea.sflag [#allocation9], %s579
        %s581 = sand.u32 %s168, 1
        %s582 = smul.addr %s581, 16
        %s583 = scalar_lea.vmem [#allocation8], %s582
        %s584 = sand.u32 %s30, 1
        %s585 = scalar_lea.sflag [#allocation9], %s584
        %s586 = sand.u32 %s194, 1
        %s587 = smul.addr %s586, 8
        %s588 = scalar_lea.vmem [#allocation10], %s587
        // Predicated region
        $region45: #{tpu_custom_call.1} parent=35 // pred_check
          %p589 = pneg %p152
        $region46: #{tpu_custom_call.1} parent=35 // pred_check_branch
          %591 = sbr.rel (%p589) target = $region48
        $region47: #{tpu_custom_call.1} parent=35 // pred_region
          %s593 = ssub.s32 128, 128
          %594 = vsyncadd %s575, %s593
          %s595 = smul.addr %s30, 128
          %s596 = scalar_lea.hbm %s4, %s595
          %s598 = sshll.u32 %s578, 4
          %s599 = int_to_ptr.vmem [resolvable:$true] %s598
          %601 = dma.vmem_to_hbm [thread:$0]  %s599, 128, %s596, %s575
        $region48: #{tpu_custom_call.1} parent=35 // pred_fallthru
          _
        // Predicated region
        $region49: #{tpu_custom_call.1} parent=35 // pred_check
          %p602 = pneg %p178
        $region50: #{tpu_custom_call.1} parent=35 // pred_check_branch
          %604 = sbr.rel (%p602) target = $region52
        $region51: #{tpu_custom_call.1} parent=35 // pred_region
          %s606 = ssub.s32 256, 256
          %607 = vsyncadd %s580, %s606
          %s608 = smul.addr %s30, 2
          %s609 = smul.addr %s608, 128
          %s610 = scalar_lea.hbm %s5, %s609
          %s611 = sshll.u32 %s583, 4
          %s612 = int_to_ptr.vmem [resolvable:$true] %s611
          %617 = dma.vmem_to_hbm [thread:$0]  %s612, 256, %s610, %s580, 128, 128, 8
        $region52: #{tpu_custom_call.1} parent=35 // pred_fallthru
          _
        // Predicated region
        $region53: #{tpu_custom_call.1} parent=35 // pred_check
          %p618 = pneg %p204
        $region54: #{tpu_custom_call.1} parent=35 // pred_check_branch
          %620 = sbr.rel (%p618) target = $region56
        $region55: #{tpu_custom_call.1} parent=35 // pred_region
          %s622 = ssub.s32 128, 128
          %623 = vsyncadd %s585, %s622
          %s624 = smul.addr %s30, 128
          %s625 = scalar_lea.hbm %s6, %s624
          %s627 = sshll.u32 %s588, 4
          %s628 = int_to_ptr.vmem [resolvable:$true] %s627
          %630 = dma.vmem_to_hbm [thread:$0]  %s628, 128, %s625, %s585
        $region56: #{tpu_custom_call.1} parent=35 // pred_fallthru
          _
      $region36: #{tpu_custom_call.1} parent=5 // pred_fallthru
        _
      %p631 = scmp.le.s32.totalorder 2, %s25
      // Predicated region
      $region57: #{tpu_custom_call.1} parent=5 // pred_check
        %p632 = pneg %p631
      $region58: #{tpu_custom_call.1} parent=5 // pred_check_branch
        %634 = sbr.rel (%p632) target = $region60
      $region59: #{tpu_custom_call.1} parent=5 // pred_region
        %s635 = ssub.s32 %s25, 2
        // Predicated region
        $region61: #{tpu_custom_call.1} parent=59 // pred_check
          %p636 = pneg %p158
        $region62: #{tpu_custom_call.1} parent=59 // pred_check_branch
          %638 = sbr.rel (%p636) target = $region64
        $region63: #{tpu_custom_call.1} parent=59 // pred_region
          %s639 = sand.u32 %s143, 1
          %s640 = scalar_lea.sflag [#allocation4], %s639
          %s641 = sand.u32 %s143, 1
          %s642 = smul.addr %s641, 8
          %s643 = scalar_lea.vmem [#allocation7], %s642
          %644 = dma.done %s640, 128
        $region64: #{tpu_custom_call.1} parent=59 // pred_fallthru
          _
        // Predicated region
        $region65: #{tpu_custom_call.1} parent=59 // pred_check
          %p645 = pneg %p184
        $region66: #{tpu_custom_call.1} parent=59 // pred_check_branch
          %647 = sbr.rel (%p645) target = $region68
        $region67: #{tpu_custom_call.1} parent=59 // pred_region
          %s648 = sand.u32 %s31, 1
          %s649 = scalar_lea.sflag [#allocation9], %s648
          %s650 = sand.u32 %s169, 1
          %s651 = smul.addr %s650, 16
          %s652 = scalar_lea.vmem [#allocation8], %s651
          %653 = dma.done %s649, 256
        $region68: #{tpu_custom_call.1} parent=59 // pred_fallthru
          _
        // Predicated region
        $region69: #{tpu_custom_call.1} parent=59 // pred_check
          %p654 = pneg %p210
        $region70: #{tpu_custom_call.1} parent=59 // pred_check_branch
          %656 = sbr.rel (%p654) target = $region72
        $region71: #{tpu_custom_call.1} parent=59 // pred_region
          %s657 = sand.u32 %s31, 1
          %s658 = scalar_lea.sflag [#allocation9], %s657
          %s659 = sand.u32 %s195, 1
          %s660 = smul.addr %s659, 8
          %s661 = scalar_lea.vmem [#allocation10], %s660
          %662 = dma.done %s658, 128
        $region72: #{tpu_custom_call.1} parent=59 // pred_fallthru
          _
      $region60: #{tpu_custom_call.1} parent=5 // pred_fallthru
        _
    $region6: #{tpu_custom_call.1} parent=1 // loop_footer
      %s29 = sadd.s32 1, %s25
    $region7: #{tpu_custom_call.1} parent=1 // loop_footer_branch
      %24 = sbr.rel target = $region3
    $region8: #{tpu_custom_call.1} parent=1 // loop_exit
      _
    %663 = vsyncpa [#allocation3], 1
    %s664 = scalar_lea.sflag [#allocation3], 1
    %665 = vsyncpa %s664, 1
    %666 = vsyncpa [#allocation6], 1
    %s667 = scalar_lea.sflag [#allocation6], 1
    %668 = vsyncpa %s667, 1
    %669 = vsyncpa [#allocation4], 1
    %s670 = scalar_lea.sflag [#allocation4], 1
    %671 = vsyncpa %s670, 1
    %672 = vsyncpa [#allocation9], 1
    %s673 = scalar_lea.sflag [#allocation9], 1
    %674 = vsyncpa %s673, 1

</llo_original>
